<compile_context>
chip_gen: v6e
topology: v6e:2x2x1
jax: 0.10.0
libtpu: 0.0.40
codegen_flags: <defaults>
</compile_context>

<pallas_src>
from functools import partial

import jax
import jax.numpy as jnp
from jax import lax
from jax.experimental import pallas as pl
from jax.experimental.pallas import tpu as pltpu

LN_EPS = 1e-5
NEG_INF = -1e10


# ----------------------------- small utilities ------------------------------

def _vmem_capacity_bytes():
    """Physical per-core VMEM.  Pure hardware query with a deterministic,
    conservative fallback (smallest targeted generation, v7x = 64 MiB)."""
    try:
        cap = int(getattr(pltpu.get_tpu_info(), "vmem_capacity_bytes", 0))
        if cap > 0:
            return cap
    except Exception:  # introspection only; never affects kernel semantics
        pass
    return 64 * 2**20


def _pick_q_tile(L, vmem_cap):
    # Bigger tiles amortize the ~0.35us per-grid-step overhead; cap lower on the
    # 64 MiB (v7x) parts than on 128 MiB (v5e/v6e) parts.
    max_tile = 512 if vmem_cap >= (96 << 20) else 256
    for cand in (max_tile, 256, 128):
        if cand < L and L % cand == 0:
            return cand
    return L


def _pick_ff_chunk(F):
    if F <= 512:
        return F
    for cand in (512, 256, 128):
        if F % cand == 0:
            return cand
    return F


def _head_group(n_heads, dh):
    # Smallest divisor of n_heads whose combined width is >= 128 lanes so every ctx
    # store is lane-dense; if D < 128 the whole ctx is one full-extent store anyway.
    for cand in range(1, n_heads + 1):
        if n_heads % cand == 0 and cand * dh >= 128:
            return cand
    return n_heads


# ----------------------------- kernel helpers -----------------------------

def _layer_norm(x, gamma, beta):
    """x: (L, D) f32; gamma/beta: (1, D) f32.  Stats in f32."""
    mean = jnp.mean(x, axis=-1, keepdims=True)
    xc = x - mean
    var = jnp.mean(xc * xc, axis=-1, keepdims=True)
    scale = lax.rsqrt(var + LN_EPS) * gamma          # fold gamma into the rsqrt scale
    return xc * scale + beta


def _attend(q, kv_ref, mask, wo_ref, bo_ref, ctx_ref, n_heads):
    """Multi-head attention core for one (batch, query-tile) block.

    q:      (Lq, D) f32, already projected (bias added).
    kv_ref: (Lk, 2D) bf16 ref holding the pre-projected [K | V] slab.
    mask:   (1 or Lq, Lk) int8 (non-zero = keep).
    wo_ref: (D, D) bf16, bo_ref: (1, D) f32, ctx_ref: (Lq, D) bf16 VMEM scratch.
    """
    f32, bf16 = jnp.float32, jnp.bfloat16
    Lq, D = q.shape
    dh = D // n_heads
    qb = (q * (1.0 / float(dh) ** 0.5)).astype(bf16)   # fold 1/sqrt(dh) once (VPU)
    keep = mask != 0

    g = _head_group(n_heads, dh)                        # heads per lane-dense group
    gw = g * dh
    for g0 in range(0, n_heads, g):                     # static unroll over head groups
        c0 = g0 * dh
        kg = kv_ref[:, c0:c0 + gw]                      # (Lk, gw) bf16, lane-dense load
        vg = kv_ref[:, D + c0:D + c0 + gw]
        parts = []
        for j in range(g):
            sl = slice(j * dh, (j + 1) * dh)
            # (Lq, dh) . (Lk, dh) -> (Lq, Lk): contract the head dim (no explicit .T)
            s = lax.dot_general(qb[:, c0 + j * dh:c0 + (j + 1) * dh], kg[:, sl],
                                dimension_numbers=(((1,), (1,)), ((), ())),
                                preferred_element_type=f32)
            s = jnp.where(keep, s, NEG_INF)
            m = jnp.max(s, axis=-1, keepdims=True)
            e = jnp.exp(s - m)
            p = e * pl.reciprocal(jnp.sum(e, axis=-1, keepdims=True), approx=True)
            parts.append(jnp.dot(p.astype(bf16), vg[:, sl],
                                 preferred_element_type=f32).astype(bf16))
        grp = parts[0] if len(parts) == 1 else jnp.concatenate(parts, axis=-1)
        ctx_ref[:, c0:c0 + gw] = grp                    # one lane-dense store per group

    # single wide output projection over the concatenated heads
    return jnp.dot(ctx_ref[...], wo_ref[...], preferred_element_type=f32) + bo_ref[...]


# ------------------------------- main kernel -------------------------------

def decoder_layer_kernel(xq_ref, kvs_ref, kvc_ref, tmask_ref, smask_ref,
                         wq_s_ref, wo_s_ref, bq_s_ref, bo_s_ref,
                         wq_c_ref, wo_c_ref, bq_c_ref, bo_c_ref,
                         ln_g_ref, ln_b_ref,
                         w1_ref, b1_ref, w2_ref, b2_ref,
                         out_ref, ctx_ref, *, n_heads, ff_chunk):
    f32, bf16 = jnp.float32, jnp.bfloat16

    x = xq_ref[...].astype(f32)          # (tq, D) query rows (residual / LN path)

    # ---- 1) masked self-attention + residual + LayerNorm ----
    q = jnp.dot(x.astype(bf16), wq_s_ref[...],
                preferred_element_type=f32) + bq_s_ref[...]
    sa = _attend(q, kvs_ref, tmask_ref[...], wo_s_ref, bo_s_ref, ctx_ref, n_heads)
    x = _layer_norm(x + sa, ln_g_ref[0], ln_b_ref[0])

    # ---- 2) encoder-decoder cross-attention + residual + LayerNorm ----
    q = jnp.dot(x.astype(bf16), wq_c_ref[...],
                preferred_element_type=f32) + bq_c_ref[...]
    ca = _attend(q, kvc_ref, smask_ref[...], wo_c_ref, bo_c_ref, ctx_ref, n_heads)
    x = _layer_norm(x + ca, ln_g_ref[1], ln_b_ref[1])

    # ---- 3) position-wise feed-forward (ReLU), chunked over F ----
    xb = x.astype(bf16)
    F = w1_ref.shape[1]
    ff = jnp.zeros_like(x)
    for fs in range(0, F, ff_chunk):     # static unroll; bounds the live (tq, fc) hidden
        fe = fs + ff_chunk
        h = jnp.dot(xb, w1_ref[:, fs:fe], preferred_element_type=f32) + b1_ref[:, fs:fe]
        h = jnp.maximum(h, 0.0)
        ff = ff + jnp.dot(h.astype(bf16), w2_ref[fs:fe, :], preferred_element_type=f32)
    ff = ff + b2_ref[...]
    x = _layer_norm(x + ff, ln_g_ref[2], ln_b_ref[2])

    out_ref[...] = x.astype(out_ref.dtype)


# --------------------- K/V pre-projection (once per batch) -------------------

def _kv_proj_kernel(x_ref, w_ref, b_ref, out_ref):
    out_ref[...] = (jnp.dot(x_ref[...], w_ref[...], preferred_element_type=jnp.float32)
                    + b_ref[...]).astype(out_ref.dtype)


def _kv_project(x_bf16, w_bf16, b_f32, row_tile=512):
    """(B, N, D) bf16 @ (D, 2D) bf16 + (1, 2D) f32 -> (B, N, 2D) bf16."""
    B, N, D = x_bf16.shape
    two_d = w_bf16.shape[1]
    tn = row_tile if (N > row_tile and N % row_tile == 0) else N
    return pl.pallas_call(
        _kv_proj_kernel,
        out_shape=jax.ShapeDtypeStruct((B, N, two_d), jnp.bfloat16),
        grid=(B, N // tn),
        in_specs=[pl.BlockSpec((None, tn, D), lambda b, i: (b, i, 0)),
                  pl.BlockSpec((D, two_d), lambda b, i: (0, 0)),
                  pl.BlockSpec((1, two_d), lambda b, i: (0, 0))],
        out_specs=pl.BlockSpec((None, tn, two_d), lambda b, i: (b, i, 0)),
        compiler_params=pltpu.CompilerParams(
            dimension_semantics=("parallel", "parallel")),
    )(x_bf16, w_bf16, b_f32)


# ------------------------------- wrapper -----------------------------------

# Only the error types a pipeline_mode=Buffered(1) rejection can plausibly raise.
_PIPELINE_FALLBACK_ERRORS = (TypeError, ValueError, NotImplementedError)
if hasattr(pltpu, "LoweringException"):
    _PIPELINE_FALLBACK_ERRORS = _PIPELINE_FALLBACK_ERRORS + (pltpu.LoweringException,)


def decoder_layer(trg_BLD, enc_src_BCD, src_mask_B11C, trg_mask_B1LL, params,
                  n_heads, q_tile=None):
    B, L, D = trg_BLD.shape
    C = enc_src_BCD.shape[1]
    F = params["w1"].shape[1]
    assert D % n_heads == 0

    f32, bf16 = jnp.float32, jnp.bfloat16
    vmem_cap = _vmem_capacity_bytes()

    if q_tile is None:
        tq = _pick_q_tile(L, vmem_cap)
    else:
        tq = q_tile if (L > q_tile and L % q_tile == 0) else L
    nqt = L // tq
    ff_chunk = _pick_ff_chunk(F)

    # ---- repack weights (bf16 MXU operands; K/V projection weights only feed the
    #      pre-projection pass and never enter the main kernel) ----
    W_s, b_s = params["w_self"], params["b_self"]
    W_c, b_c = params["w_cross"], params["b_cross"]
    wq_s, wo_s = W_s[0].astype(bf16), W_s[3].astype(bf16)
    bq_s, bo_s = b_s[0].astype(f32), b_s[3].astype(f32)
    wq_c, wo_c = W_c[0].astype(bf16), W_c[3].astype(bf16)
    bq_c, bo_c = b_c[0].astype(f32), b_c[3].astype(f32)
    wkv_s = jnp.concatenate([W_s[1], W_s[2]], axis=1).astype(bf16)   # (D, 2D)
    bkv_s = jnp.concatenate([b_s[1], b_s[2]], axis=1).astype(f32)    # (1, 2D)
    wkv_c = jnp.concatenate([W_c[1], W_c[2]], axis=1).astype(bf16)
    bkv_c = jnp.concatenate([b_c[1], b_c[2]], axis=1).astype(f32)
    ln_g = params["ln_g"].astype(f32)
    ln_b = params["ln_b"].astype(f32)
    w1, b1 = params["w1"].astype(bf16), params["b1"].astype(f32)
    w2, b2 = params["w2"].astype(bf16), params["b2"].astype(f32)

    # ---- K/V pre-projection: once per batch element, NOT once per query tile ----
    kv_self = _kv_project(trg_BLD.astype(bf16), wkv_s, bkv_s)        # (B, L, 2D) bf16
    kv_cross = _kv_project(enc_src_BCD.astype(bf16), wkv_c, bkv_c)   # (B, C, 2D) bf16

    # ---- masks: exact keep/mask decision in the input dtype, shipped as int8 ----
    trg_mask = (trg_mask_B1LL.reshape(B, L, L) > 0).astype(jnp.int8)
    src_mask = (src_mask_B11C.reshape(B, 1, C) > 0).astype(jnp.int8)

    weights = (wq_s, wo_s, bq_s, bo_s, wq_c, wo_c, bq_c, bo_c,
               ln_g, ln_b, w1, b1, w2, b2)

    out_dtype = trg_BLD.dtype
    kernel = partial(decoder_layer_kernel, n_heads=n_heads, ff_chunk=ff_chunk)
    out_shape = jax.ShapeDtypeStruct((B, L, D), out_dtype)

    def vmem_limit(single_buffer_weights):
        w_bytes = sum(int(w.size) * w.dtype.itemsize for w in weights)
        act_in = tq * D * 4 + L * 2 * D * 2 + C * 2 * D * 2 + tq * L + C
        act_out = tq * D * out_dtype.itemsize
        scratch = tq * D * 2
        # live in-kernel intermediates: scores/softmax, FFN chunk hidden, residuals
        live = 4 * (2 * tq * max(L, C) + tq * ff_chunk + 4 * tq * D)
        est = (2 * (act_in + act_out) + (1 if single_buffer_weights else 2) * w_bytes
               + scratch + live + (2 << 20))
        return int(min(int(0.85 * vmem_cap), max(32 << 20, est)))

    def build(single_buffer_weights):
        def wspec(shape):
            zero = (0,) * len(shape)
            if single_buffer_weights:
                # block index is constant across the whole grid -> single-buffer it
                return pl.BlockSpec(shape, lambda b, qi: zero,
                                    pipeline_mode=pl.Buffered(1))
            return pl.BlockSpec(shape, lambda b, qi: zero)

        in_specs = [
            pl.BlockSpec((None, tq, D), lambda b, qi: (b, qi, 0)),      # query tile (f32)
            pl.BlockSpec((None, L, 2 * D), lambda b, qi: (b, 0, 0)),    # self  K|V (bf16)
            pl.BlockSpec((None, C, 2 * D), lambda b, qi: (b, 0, 0)),    # cross K|V (bf16)
            pl.BlockSpec((None, tq, L), lambda b, qi: (b, qi, 0)),      # trg mask (int8)
            pl.BlockSpec((None, 1, C), lambda b, qi: (b, 0, 0)),        # src mask (int8)
        ] + [wspec(w.shape) for w in weights]

        return pl.pallas_call(
            kernel,
            out_shape=out_shape,
            grid=(B, nqt),
            in_specs=in_specs,
            out_specs=pl.BlockSpec((None, tq, D), lambda b, qi: (b, qi, 0)),
            scratch_shapes=[pltpu.VMEM((tq, D), jnp.bfloat16)],         # ctx slab (bf16)
            compiler_params=pltpu.CompilerParams(
                dimension_semantics=("parallel", "parallel"),
                vmem_limit_bytes=vmem_limit(single_buffer_weights)),
        )

    args = (trg_BLD, kv_self, kv_cross, trg_mask, src_mask) + weights
    if hasattr(pl, "Buffered"):
        try:
            return build(True)(*args)
        except _PIPELINE_FALLBACK_ERRORS:
            # Narrow fallback for jax/libtpu versions that reject pipeline_mode /
            # Buffered(1).  Genuine kernel bugs would fail in the path below too,
            # so nothing is silently masked.
            pass
    return build(False)(*args)


# --------------------------- pure-JAX reference -----------------------------

def _ref_ln(x, gamma, beta):
    mean = jnp.mean(x, axis=-1, keepdims=True)
    var = jnp.mean((x - mean) ** 2, axis=-1, keepdims=True)
    return (x - mean) / jnp.sqrt(var + LN_EPS) * gamma + beta


def _ref_mha(xq, xkv, mask, W, b, n_heads):
    q = xq @ W[0] + b[0]
    k = xkv @ W[1] + b[1]
    v = xkv @ W[2] + b[2]
    B, Lq, D = q.shape
    Lk = k.shape[1]
    dh = D // n_heads
    qh = q.reshape(B, Lq, n_heads, dh).transpose(0, 2, 1, 3)
    kh = k.reshape(B, Lk, n_heads, dh).transpose(0, 2, 1, 3)
    vh = v.reshape(B, Lk, n_heads, dh).transpose(0, 2, 1, 3)
    s = (qh @ kh.transpose(0, 1, 3, 2)) / (float(dh) ** 0.5)
    s = jnp.where(mask > 0, s, NEG_INF)
    p = jax.nn.softmax(s, axis=-1)
    o = (p @ vh).transpose(0, 2, 1, 3).reshape(B, Lq, D)
    return o @ W[3] + b[3]


def decoder_layer_ref(trg, enc, src_mask, trg_mask, params, n_heads):
    x = trg
    sa = _ref_mha(x, x, trg_mask, params["w_self"], params["b_self"], n_heads)
    x = _ref_ln(x + sa, params["ln_g"][0], params["ln_b"][0])
    ca = _ref_mha(x, enc, src_mask, params["w_cross"], params["b_cross"], n_heads)
    x = _ref_ln(x + ca, params["ln_g"][1], params["ln_b"][1])
    h = jnp.maximum(x @ params["w1"] + params["b1"], 0.0)
    ff = h @ params["w2"] + params["b2"]
    x = _ref_ln(x + ff, params["ln_g"][2], params["ln_b"][2])
    return x


# --------------------------------- main -------------------------------------

def init_params(key, D, F):
    ks = jax.random.split(key, 8)
    s = 0.05
    return {
        "w_self": s * jax.random.normal(ks[0], (4, D, D), jnp.float32),
        "b_self": s * jax.random.normal(ks[1], (4, 1, D), jnp.float32),
        "w_cross": s * jax.random.normal(ks[2], (4, D, D), jnp.float32),
        "b_cross": s * jax.random.normal(ks[3], (4, 1, D), jnp.float32),
        "ln_g": jnp.ones((3, 1, D), jnp.float32)
                + 0.01 * jax.random.normal(ks[4], (3, 1, D), jnp.float32),
        "ln_b": 0.01 * jax.random.normal(ks[5], (3, 1, D), jnp.float32),
        "w1": s * jax.random.normal(ks[6], (D, F), jnp.float32),
        "b1": jnp.zeros((1, F), jnp.float32),
        "w2": s * jax.random.normal(ks[7], (F, D), jnp.float32),
        "b2": jnp.zeros((1, D), jnp.float32),
    }


if __name__ == "__main__":
    B, L, C, D, H, FF_MULT = 2, 8, 16, 32, 4, 4
    F = D * FF_MULT

    key = jax.random.PRNGKey(0)
    k_trg, k_enc, k_par = jax.random.split(key, 3)

    trg = jax.random.normal(k_trg, (B, L, D), jnp.float32)
    enc = jax.random.normal(k_enc, (B, C, D), jnp.float32)

    # causal target mask (B, 1, L, L); padded source mask (B, 1, 1, C)
    trg_mask = jnp.broadcast_to(
        jnp.tril(jnp.ones((L, L), jnp.float32))[None, None], (B, 1, L, L))
    src_len = jnp.array([C, C - 4])
    src_mask = (jnp.arange(C)[None, :] < src_len[:, None]).astype(
        jnp.float32).reshape(B, 1, 1, C)

    params = init_params(k_par, D, F)

    out = decoder_layer(trg, enc, src_mask, trg_mask, params, H)
    jax.block_until_ready(out)

    ref = decoder_layer_ref(trg, enc, src_mask, trg_mask, params, H)
    assert out.shape == (B, L, D)
    # bf16 MXU inputs + approx reciprocal introduce ~1e-3 relative error vs the pure
    # f32 reference; 2e-2 is a comfortable bound that still catches real logic bugs.
    assert jnp.allclose(out, ref, atol=2e-2, rtol=2e-2), "mismatch vs reference"

    print("KERNEL_OK")
</pallas_src>

<mosaic_0001>
module attributes {stable_mosaic.version = 11 : i64} {
  func.func @_kv_proj_kernel(%arg0: i32, %arg1: i32, %arg2: memref<1x8x32xbf16, #tpu.memory_space<vmem>>, %arg3: memref<32x64xbf16, #tpu.memory_space<vmem>>, %arg4: memref<1x64xf32, #tpu.memory_space<vmem>>, %arg5: memref<1x8x64xbf16, #tpu.memory_space<vmem>>) attributes {dimension_semantics = [#tpu.dimension_semantics<parallel>, #tpu.dimension_semantics<parallel>], iteration_bounds = array<i64: 2, 1>, scalar_prefetch = 0 : i64, scratch_operands = 0 : i64, tpu.core_type = #tpu.core_type<tc>, window_params = [{transform_indices = @transform_0, window_bounds = array<i64: 1, 8, 32>}, {pipeline_mode = #tpu.pipeline_mode<synchronous>, transform_indices = @transform_1, window_bounds = array<i64: 32, 64>}, {pipeline_mode = #tpu.pipeline_mode<synchronous>, transform_indices = @transform_2, window_bounds = array<i64: 1, 64>}, {transform_indices = @transform_3, window_bounds = array<i64: 1, 8, 64>}]} {
    %c0 = arith.constant 0 : index
    %c0_0 = arith.constant 0 : index
    %c0_1 = arith.constant 0 : index
    %0 = vector.load %arg2[%c0, %c0_0, %c0_1] : memref<1x8x32xbf16, #tpu.memory_space<vmem>>, vector<1x8x32xbf16>
    %1 = vector.shape_cast %0 : vector<1x8x32xbf16> to vector<8x32xbf16>
    %c0_2 = arith.constant 0 : index
    %c0_3 = arith.constant 0 : index
    %2 = vector.load %arg3[%c0_2, %c0_3] : memref<32x64xbf16, #tpu.memory_space<vmem>>, vector<32x64xbf16>
    %cst = arith.constant dense<0.000000e+00> : vector<8x64xf32>
    %3 = tpu.matmul %1, %2, %cst {dimension_numbers = #tpu.dot_dimension_numbers<[1], [0], [0], [1], [0, 0, 1, 1], [], []>} : vector<8x32xbf16>, vector<32x64xbf16>, vector<8x64xf32> -> vector<8x64xf32>
    %c0_4 = arith.constant 0 : index
    %c0_5 = arith.constant 0 : index
    %4 = vector.load %arg4[%c0_4, %c0_5] : memref<1x64xf32, #tpu.memory_space<vmem>>, vector<1x64xf32>
    %5 = vector.broadcast %4 : vector<1x64xf32> to vector<8x64xf32>
    %6 = arith.addf %3, %5 : vector<8x64xf32>
    %7 = arith.truncf %6 : vector<8x64xf32> to vector<8x64xbf16>
    %c0_6 = arith.constant 0 : index
    %c0_7 = arith.constant 0 : index
    %c0_8 = arith.constant 0 : index
    %8 = vector.load %arg5[%c0_6, %c0_7, %c0_8] : memref<1x8x64xbf16, #tpu.memory_space<vmem>>, vector<1x8x64xbf16>
    %9 = vector.shape_cast %8 : vector<1x8x64xbf16> to vector<8x64xbf16>
    %10 = vector.shape_cast %7 : vector<8x64xbf16> to vector<1x8x64xbf16>
    tpu.vector_store %arg5[%c0_6, %c0_7, %c0_8], %10 {strides = array<i32>} : memref<1x8x64xbf16, #tpu.memory_space<vmem>>, vector<1x8x64xbf16>,
    return
  }
  func.func @transform_0(%arg0: i32, %arg1: i32) -> (i32, i32, i32) {
    %c0_i32 = arith.constant 0 : i32
    %c0_i32_0 = arith.constant 0 : i32
    return %arg0, %arg1, %c0_i32 : i32, i32, i32
  }
  func.func @transform_1(%arg0: i32, %arg1: i32) -> (i32, i32) {
    %c0_i32 = arith.constant 0 : i32
    %c0_i32_0 = arith.constant 0 : i32
    %c0_i32_1 = arith.constant 0 : i32
    return %c0_i32, %c0_i32_0 : i32, i32
  }
  func.func @transform_2(%arg0: i32, %arg1: i32) -> (i32, i32) {
    %c0_i32 = arith.constant 0 : i32
    %c0_i32_0 = arith.constant 0 : i32
    %c0_i32_1 = arith.constant 0 : i32
    return %c0_i32, %c0_i32_0 : i32, i32
  }
  func.func @transform_3(%arg0: i32, %arg1: i32) -> (i32, i32, i32) {
    %c0_i32 = arith.constant 0 : i32
    %c0_i32_0 = arith.constant 0 : i32
    return %arg0, %arg1, %c0_i32 : i32, i32, i32
  }
}

</mosaic_0001>

<llo_original>
// kernel: tpu_custom_call.1
$region0: #{tpu_custom_call.1}
  #allocation0 [shape = 'u32[]', space=smem, size = 0x4, offset = 0x4, fixed_abs, tag = 'smem constant byte address 0x4 - core index']
  #allocation1 [shape = 'u32[144,128]{1,0:T(1,128)}', space=vmem, size = 0x12000, scoped, tag = 'internal scratch']
  %s0 = inlined_call_operand.hbm [shape: bf16[2,8,32], index: 0, kind: input, shape index: {}]
  %s1 = inlined_call_operand.hbm [shape: bf16[32,64], index: 1, kind: input, shape index: {}]
  %s2 = inlined_call_operand.vmem [shape: f32[1,64], index: 2, kind: input, shape index: {}]
  %s3 = inlined_call_operand.hbm [shape: bf16[2,8,64], index: 3, kind: output, shape index: {}]
  %s4 = sld [smem:[#allocation0]]
  $region53: #{tpu_custom_call.1} parent=0
    _
  %s6 = ssub.s32 1, %s4
  %s7 = scalar_select 0, %s6, %s4
  $region1: #{tpu_custom_call.1} parent=0
    #allocation2 [shape = 'u8[4096]{0}', space=vmem, size = 0x1000, scoped, tag = 'input window, operand 0']
    #allocation3 [shape = 's32[2]{0}', space=sflag, size = 0x8, scoped, tag = 'scoped memory for tpu_custom_call.1']
    #allocation4 [shape = 's32[2]{0}', space=sflag, size = 0x8, scoped, tag = 'scoped memory for tpu_custom_call.1']
    #allocation5 [shape = 'u8[8192]{0}', space=vmem, size = 0x2000, scoped, tag = 'input window, operand 1, single buffered']
    #allocation6 [shape = 's32[1]{0}', space=sflag, size = 0x4, scoped, tag = 'scoped memory for tpu_custom_call.1']
    #allocation7 [shape = 'u8[4096]{0}', space=vmem, size = 0x1000, scoped, tag = 'output window, operand 0']
    %8 = vsyncpa [#allocation3], 0
    %s9 = scalar_lea.sflag [#allocation3], 1
    %10 = vsyncpa %s9, 0
    %11 = vsyncpa [#allocation6], 0
    %12 = vsyncpa [#allocation4], 0
    %s13 = scalar_lea.sflag [#allocation4], 1
    %14 = vsyncpa %s13, 0
    loop: start=0, step=1, limit=4
    $region2: #{tpu_custom_call.1} parent=1 // loop_pre_header
      _
    $region3: #{tpu_custom_call.1} parent=1 // loop_header
      %s16 = sphi 0, %s20
      %p17 = scmp.ge.s32.totalorder %s16, 4
      %s23 = sphi 0, %s35
      %s24 = sphi 0, %s31
      %s25 = sphi 0, %s23
      %s26 = sphi 0, %s24
      %s27 = sphi 0, %s25
      %s28 = sphi 0, %s26
      %s40 = sphi 0, %s42
      %s43 = sphi 0, %s40
      %s44 = sphi 0, %s43
      %s60 = sphi 0, %s44
      %s64 = sphi 0, %s64
      %s66 = sphi 0, %s64
      %s67 = sphi 0, %s66
      %s81 = sphi 0, %s67
      %s85 = sphi 0, %s85
      %s87 = sphi 0, %s85
      %s88 = sphi 0, %s87
      %s102 = sphi 0, %s88
      %s110 = sphi 0, %s112
      %s113 = sphi 0, %s110
      %s114 = sphi 0, %s113
      %s130 = sphi 0, %s114
    $region4: #{tpu_custom_call.1} parent=1 // loop_header_branch
      %19 = sbr.rel (%p17) target = $region8
    $region5: #{tpu_custom_call.1} parent=1 // loop_body
      %s21 = ssub.s32 %s16, 1
      %s22 = ssub.s32 %s16, 2
      %s29 = sadd.s32 1, %s24
      %p30 = scmp.ge.s32.totalorder %s29, 1
      %s31 = scalar_select %p30, 0, %s29
      %s32 = sadd.s32 1, %s23
      %s33 = scalar_select %p30, %s32, %s23
      %p34 = scmp.ge.s32.totalorder %s33, 2
      %s35 = scalar_select %p34, 0, %s33
      %s36 = ssub.s32 %s23, %s35
      %s37 = ssub.s32 %s24, %s31
      %s38 = sor.u32 %s36, %s37
      %p39 = scmp.eq.s32.totalorder %s38, 0
      %s41 = sadd.s32 %s40, 1
      %s42 = scalar_select %p39, %s40, %s41
      %p45 = pneg %p39
      %p46 = scmp.eq.s32.totalorder %s16, 1
      %p47 = por %p45, %p46
      %p48 = scmp.ne.s32.totalorder %s40, %s43
      %p49 = scmp.eq.s32.totalorder %s16, 0
      %p50 = por %p48, %p49
      %p51 = scmp.ne.s32.totalorder %s40, %s43
      %p52 = scmp.eq.s32.totalorder %s21, 1
      %p53 = por %p51, %p52
      %p54 = scmp.ne.s32.totalorder %s43, %s44
      %p55 = scmp.eq.s32.totalorder %s21, 0
      %p56 = por %p54, %p55
      %p57 = scmp.ne.s32.totalorder %s43, %s44
      %p58 = scmp.eq.s32.totalorder %s22, 1
      %p59 = por %p57, %p58
      %p61 = scmp.ne.s32.totalorder %s44, %s60
      %p62 = scmp.eq.s32.totalorder %s22, 0
      %p63 = por %p61, %p62
      %s65 = sadd.s32 %s64, 1
      %p68 = scmp.eq.s32.totalorder %s16, 1
      %p69 = scmp.ne.s32.totalorder %s64, %s66
      %p70 = scmp.eq.s32.totalorder %s16, 0
      %p71 = por %p69, %p70
      %p72 = scmp.ne.s32.totalorder %s64, %s66
      %p73 = scmp.eq.s32.totalorder %s21, 1
      %p74 = por %p72, %p73
      %p75 = scmp.ne.s32.totalorder %s66, %s67
      %p76 = scmp.eq.s32.totalorder %s21, 0
      %p77 = por %p75, %p76
      %p78 = scmp.ne.s32.totalorder %s66, %s67
      %p79 = scmp.eq.s32.totalorder %s22, 1
      %p80 = por %p78, %p79
      %p82 = scmp.ne.s32.totalorder %s67, %s81
      %p83 = scmp.eq.s32.totalorder %s22, 0
      %p84 = por %p82, %p83
      %s86 = sadd.s32 %s85, 1
      %p89 = scmp.eq.s32.totalorder %s16, 1
      %p90 = scmp.ne.s32.totalorder %s85, %s87
      %p91 = scmp.eq.s32.totalorder %s16, 0
      %p92 = por %p90, %p91
      %p93 = scmp.ne.s32.totalorder %s85, %s87
      %p94 = scmp.eq.s32.totalorder %s21, 1
      %p95 = por %p93, %p94
      %p96 = scmp.ne.s32.totalorder %s87, %s88
      %p97 = scmp.eq.s32.totalorder %s21, 0
      %p98 = por %p96, %p97
      %p99 = scmp.ne.s32.totalorder %s87, %s88
      %p100 = scmp.eq.s32.totalorder %s22, 1
      %p101 = por %p99, %p100
      %p103 = scmp.ne.s32.totalorder %s88, %s102
      %p104 = scmp.eq.s32.totalorder %s22, 0
      %p105 = por %p103, %p104
      %s106 = ssub.s32 %s23, %s35
      %s107 = ssub.s32 %s24, %s31
      %s108 = sor.u32 %s106, %s107
      %p109 = scmp.eq.s32.totalorder %s108, 0
      %s111 = sadd.s32 %s110, 1
      %s112 = scalar_select %p109, %s110, %s111
      %p115 = pneg %p109
      %p116 = scmp.eq.s32.totalorder %s16, 1
      %p117 = por %p115, %p116
      %p118 = scmp.ne.s32.totalorder %s110, %s113
      %p119 = scmp.eq.s32.totalorder %s16, 0
      %p120 = por %p118, %p119
      %p121 = scmp.ne.s32.totalorder %s110, %s113
      %p122 = scmp.eq.s32.totalorder %s21, 1
      %p123 = por %p121, %p122
      %p124 = scmp.ne.s32.totalorder %s113, %s114
      %p125 = scmp.eq.s32.totalorder %s21, 0
      %p126 = por %p124, %p125
      %p127 = scmp.ne.s32.totalorder %s113, %s114
      %p128 = scmp.eq.s32.totalorder %s22, 1
      %p129 = por %p127, %p128
      %p131 = scmp.ne.s32.totalorder %s114, %s130
      %p132 = scmp.eq.s32.totalorder %s22, 0
      %p133 = por %p131, %p132
      %p134 = scmp.le.s32.totalorder 1, %s16
      %p135 = scmp.lt.s32.totalorder %s16, 3
      %p136 = pnand %p134, %p135
      %p137 = pneg %p136
      // Predicated region
      $region9: #{tpu_custom_call.1} parent=5 // pred_check
        _
      $region10: #{tpu_custom_call.1} parent=5 // pred_check_branch
        %139 = sbr.rel (%p136) target = $region12
      $region11: #{tpu_custom_call.1} parent=5 // pred_region
        %s140 = ssub.s32 %s16, 1
        // Predicated region
        $region13: #{tpu_custom_call.1} parent=11 // pred_check
          %p141 = pneg %p77
        $region14: #{tpu_custom_call.1} parent=11 // pred_check_branch
          %143 = sbr.rel (%p141) target = $region16
        $region15: #{tpu_custom_call.1} parent=11 // pred_region
          %s145 = ssub.s32 256, 256
          %146 = vsyncadd [#allocation6], %s145
          %s147 = sshll.u32 [#allocation5], 4
          %s148 = int_to_ptr.vmem [resolvable:$true] %s147
          %153 = dma.hbm_to_vmem [thread:$0]  %s1, 256, %s148, [#allocation6], 64, 64, 4
        $region16: #{tpu_custom_call.1} parent=11 // pred_fallthru
          _
        // Predicated region
        $region17: #{tpu_custom_call.1} parent=11 // pred_check
          %p154 = pneg %p98
        $region18: #{tpu_custom_call.1} parent=11 // pred_check_branch
          %156 = sbr.rel (%p154) target = $region20
        $region19: #{tpu_custom_call.1} parent=11 // pred_region
          _
        $region20: #{tpu_custom_call.1} parent=11 // pred_fallthru
          _
      $region12: #{tpu_custom_call.1} parent=5 // pred_fallthru
        _
      %p157 = scmp.lt.s32.totalorder %s16, 2
      // Predicated region
      $region21: #{tpu_custom_call.1} parent=5 // pred_check
        %p158 = pneg %p157
      $region22: #{tpu_custom_call.1} parent=5 // pred_check_branch
        %160 = sbr.rel (%p158) target = $region24
      $region23: #{tpu_custom_call.1} parent=5 // pred_region
        // Predicated region
        $region25: #{tpu_custom_call.1} parent=23 // pred_check
          %p161 = pneg %p50
        $region26: #{tpu_custom_call.1} parent=23 // pred_check_branch
          %163 = sbr.rel (%p161) target = $region28
        $region27: #{tpu_custom_call.1} parent=23 // pred_region
          %s164 = sand.u32 %s40, 1
          %s165 = scalar_lea.sflag [#allocation3], %s164
          %s166 = sand.u32 %s40, 1
          %s167 = smul.addr %s166, 4
          %s168 = scalar_lea.vmem [#allocation2], %s167
          %s170 = ssub.s32 64, 64
          %171 = vsyncadd %s165, %s170
          %s172 = sadd.s32 %s24, %s23
          %s173 = smul.addr %s172, 64
          %s174 = scalar_lea.hbm %s0, %s173
          %s176 = sshll.u32 %s168, 4
          %s177 = int_to_ptr.vmem [resolvable:$true] %s176
          %179 = dma.hbm_to_vmem [thread:$0]  %s174, 64, %s177, %s165
        $region28: #{tpu_custom_call.1} parent=23 // pred_fallthru
          _
      $region24: #{tpu_custom_call.1} parent=5 // pred_fallthru
        _
      %p180 = scmp.le.s32.totalorder 1, %s16
      %p181 = scmp.lt.s32.totalorder %s16, 3
      %p182 = pnand %p180, %p181
      %p183 = pneg %p182
      // Predicated region
      $region29: #{tpu_custom_call.1} parent=5 // pred_check
        _
      $region30: #{tpu_custom_call.1} parent=5 // pred_check_branch
        %185 = sbr.rel (%p182) target = $region32
      $region31: #{tpu_custom_call.1} parent=5 // pred_region
        %s186 = ssub.s32 %s16, 1
        %s187 = sand.u32 %s43, 1
        %s188 = scalar_lea.sflag [#allocation3], %s187
        %s189 = sand.u32 %s43, 1
        %s190 = smul.addr %s189, 4
        %s191 = scalar_lea.vmem [#allocation2], %s190
        // Predicated region
        $region33: #{tpu_custom_call.1} parent=31 // pred_check
          %p192 = pneg %p56
        $region34: #{tpu_custom_call.1} parent=31 // pred_check_branch
          %194 = sbr.rel (%p192) target = $region36
        $region35: #{tpu_custom_call.1} parent=31 // pred_region
          %195 = dma.done %s188, 64
        $region36: #{tpu_custom_call.1} parent=31 // pred_fallthru
          _
        // Predicated region
        $region37: #{tpu_custom_call.1} parent=31 // pred_check
          %p196 = pneg %p77
        $region38: #{tpu_custom_call.1} parent=31 // pred_check_branch
          %198 = sbr.rel (%p196) target = $region40
        $region39: #{tpu_custom_call.1} parent=31 // pred_region
          %199 = dma.done [#allocation6], 256
        $region40: #{tpu_custom_call.1} parent=31 // pred_fallthru
          _
        %s200 = sand.u32 %s43, 1
        %s201 = scalar_lea.sflag [#allocation3], %s200
        %s202 = sand.u32 %s43, 1
        %s203 = smul.addr %s202, 4
        %s204 = scalar_lea.vmem [#allocation2], %s203
        %p205 = pneg %p56
        %p206 = pneg %p53
        %p207 = pneg %p77
        %p208 = pneg %p74
        %p209 = pneg %p98
        %p210 = pneg %p95
        %p211 = pneg %p126
        %p212 = pneg %p123
        %s213 = sand.u32 %s113, 1
        %s214 = scalar_lea.sflag [#allocation4], %s213
        %s215 = sand.u32 %s113, 1
        %s216 = smul.addr %s215, 4
        %s217 = scalar_lea.vmem [#allocation7], %s216
        %v219 = vld [vmem:[%s191] sm:$0xf]
        %v220 = vld [vmem:[#allocation5] sm:$0xf]
        %v221 = vld [vmem:[#allocation5 + $0x4] sm:$0xf]
        %v222 = vld [vmem:[#allocation5 + $0x8] sm:$0xf]
        %v223 = vld [vmem:[#allocation5 + $0xc] sm:$0xf]
        %v224 = vld [vmem:[%s2] sm:$0x1]
        %v226 = vlaneseq
        %v227 = vshrl.u32 %v226, 7
        %v228 = vsub.s32 0, %v227
        %v229 = vrot.slane %v224, %v228
        %v235 = vunpack.c.l.b16 %v220
        %v236 = vunpack.c.l.b16 %v221
        %v237 = vunpack.c.l.b16 %v222
        %v238 = vunpack.c.l.b16 %v223
        %v239 = vpack.c.b16 %v236, %v235
        %v240 = vpack.c.b16 %v238, %v237
        %vm243 = vcmask 261120
        %v245 = vsel %vm243, %v219, 0
        %247 = vmatprep.subr.bf16.mxu0 0
        %248 = vmatpush1.bf16.msra.mxu0 0
        %249 = vmatprep.subr.bf16.mxu0 0
        %250 = vmatpush1.bf16.msra.mxu0 0
        %251 = vmatprep.subr.bf16.mxu0 0
        %252 = vmatpush1.bf16.msra.mxu0 0
        %253 = vmatprep.subr.bf16.mxu0 0
        %254 = vmatpush1.bf16.msra.mxu0 0
        %255 = vmatprep.subr.bf16.mxu0 0
        %256 = vmatpush1.bf16.msra.mxu0 0
        %257 = vmatprep.subr.bf16.mxu0 0
        %258 = vmatpush1.bf16.msra.mxu0 0
        %259 = vmatprep.subr.bf16.mxu0 0
        %260 = vmatpush1.bf16.msra.mxu0 %v240
        %261 = vmatprep.subr.bf16.mxu0 0
        %262 = vmatpush1.bf16.msra.mxu0 %v239
        %263 = vmatprep.subr.bf16.mxu0 0
        %264 = vmatpush2.bf16.msra.mxu0 0
        %265 = vmatprep.subr.bf16.mxu0 0
        %266 = vmatpush2.bf16.msra.mxu0 0
        %267 = vmatprep.subr.bf16.mxu0 0
        %268 = vmatpush2.bf16.msra.mxu0 0
        %269 = vmatprep.subr.bf16.mxu0 0
        %270 = vmatpush2.bf16.msra.mxu0 0
        %271 = vmatprep.subr.bf16.mxu0 0
        %272 = vmatpush2.bf16.msra.mxu0 0
        %273 = vmatprep.subr.bf16.mxu0 0
        %274 = vmatpush2.bf16.msra.mxu0 0
        %275 = vmatprep.subr.bf16.mxu0 0
        %276 = vmatpush2.bf16.msra.mxu0 0
        %277 = vmatprep.subr.bf16.mxu0 0
        %278 = vmatpush2.bf16.msra.mxu0 0
        %279 = vmatprep.mubr.bf16.mxu0 0
        %280 = vmatmul.mubr.bf16.gmra.mxu0 %v245
        %v281 = vpop.f32.mrf.mxu0
        %v282 = vadd.f32 %v229, %v281
        %v283 = vpop.f32.mrf.mxu0
        %v284 = vpop.f32.mrf.mxu0
        %v285 = vpop.f32.mrf.mxu0
        %286 = vdwg.mxu0
        %v287 = vpack.c.bf16 %v282, %v282
        %vm288 = vcmask 519168
        %289 = vst.msk [vmem:[%s217] sm:$0xf] %vm288, %v287
        %s290 = sand.u32 %s113, 1
        %s291 = scalar_lea.sflag [#allocation4], %s290
        %s292 = sand.u32 %s113, 1
        %s293 = smul.addr %s292, 4
        %s294 = scalar_lea.vmem [#allocation7], %s293
        // Predicated region
        $region41: #{tpu_custom_call.1} parent=31 // pred_check
          %p295 = pneg %p123
        $region42: #{tpu_custom_call.1} parent=31 // pred_check_branch
          %297 = sbr.rel (%p295) target = $region44
        $region43: #{tpu_custom_call.1} parent=31 // pred_region
          %s299 = ssub.s32 64, 64
          %300 = vsyncadd %s291, %s299
          %s301 = sadd.s32 %s26, %s25
          %s302 = smul.addr %s301, 64
          %s303 = scalar_lea.hbm %s3, %s302
          %s305 = sshll.u32 %s294, 4
          %s306 = int_to_ptr.vmem [resolvable:$true] %s305
          %308 = dma.vmem_to_hbm [thread:$0]  %s306, 64, %s303, %s291
        $region44: #{tpu_custom_call.1} parent=31 // pred_fallthru
          _
      $region32: #{tpu_custom_call.1} parent=5 // pred_fallthru
        _
      %p309 = scmp.le.s32.totalorder 2, %s16
      // Predicated region
      $region45: #{tpu_custom_call.1} parent=5 // pred_check
        %p310 = pneg %p309
      $region46: #{tpu_custom_call.1} parent=5 // pred_check_branch
        %312 = sbr.rel (%p310) target = $region48
      $region47: #{tpu_custom_call.1} parent=5 // pred_region
        %s313 = ssub.s32 %s16, 2
        // Predicated region
        $region49: #{tpu_custom_call.1} parent=47 // pred_check
          %p314 = pneg %p129
        $region50: #{tpu_custom_call.1} parent=47 // pred_check_branch
          %316 = sbr.rel (%p314) target = $region52
        $region51: #{tpu_custom_call.1} parent=47 // pred_region
          %s317 = sand.u32 %s114, 1
          %s318 = scalar_lea.sflag [#allocation4], %s317
          %s319 = sand.u32 %s114, 1
          %s320 = smul.addr %s319, 4
          %s321 = scalar_lea.vmem [#allocation7], %s320
          %322 = dma.done %s318, 64
        $region52: #{tpu_custom_call.1} parent=47 // pred_fallthru
          _
      $region48: #{tpu_custom_call.1} parent=5 // pred_fallthru
        _
    $region6: #{tpu_custom_call.1} parent=1 // loop_footer
      %s20 = sadd.s32 1, %s16
    $region7: #{tpu_custom_call.1} parent=1 // loop_footer_branch
      %15 = sbr.rel target = $region3
    $region8: #{tpu_custom_call.1} parent=1 // loop_exit
      _
    %323 = vsyncpa [#allocation3], 1
    %s324 = scalar_lea.sflag [#allocation3], 1
    %325 = vsyncpa %s324, 1
    %326 = vsyncpa [#allocation6], 1
    %327 = vsyncpa [#allocation4], 1
    %s328 = scalar_lea.sflag [#allocation4], 1
    %329 = vsyncpa %s328, 1

</llo_original>
